<compile_context>
chip_gen: v5e
topology: v5e:2x2
jax: 0.10.0
libtpu: 0.0.40
codegen_flags: <defaults>
</compile_context>

<pallas_src>
import functools

import jax
import jax.numpy as jnp
from jax.experimental import pallas as pl
from jax.experimental.pallas import tpu as pltpu

EPS = 1e-5  # torch.nn.BatchNorm1d default


def _round_up(x, m):
    return ((x + m - 1) // m) * m


def mlp_kernel(x_ref, w1_ref, b1_ref, gamma_ref, beta_ref, w2_ref, b2_ref,
               o_ref, acc1_ref, acc_out_ref, *, batchnorm):
    # grid = (hidden blocks k [outer, arbitrary], input blocks i [inner, arbitrary])
    k = pl.program_id(0)
    i = pl.program_id(1)
    nk = pl.num_programs(0)
    ni = pl.num_programs(1)

    @pl.when(jnp.logical_and(k == 0, i == 0))
    def _():
        acc_out_ref[...] = jnp.zeros_like(acc_out_ref)

    @pl.when(i == 0)
    def _():
        acc1_ref[...] = jnp.zeros_like(acc1_ref)

    # GEMM1 partial: x[:, i-block] @ W1[i-block, k-block]  (bf16 MXU, f32 acc).
    acc1_ref[...] += jnp.dot(x_ref[...], w1_ref[...],
                             preferred_element_type=jnp.float32)

    # Once the contraction over the input dim is complete for this hidden block:
    # BN (train-mode batch stats) + ReLU, then accumulate GEMM2 into the
    # persistent full-width output accumulator.  This runs exactly once per
    # hidden block for the whole kernel (no per-output-block recompute).
    @pl.when(i == ni - 1)
    def _():
        h = acc1_ref[...]
        if batchnorm:
            # Fused moments: var = E[h^2] - mean^2 (single pass over (B, th)).
            # b1 is intentionally omitted: it cancels exactly in (h - mean).
            m1 = jnp.mean(h, axis=0, keepdims=True)
            m2 = jnp.mean(h * h, axis=0, keepdims=True)
            var = jnp.maximum(m2 - m1 * m1, 0.0)
            s = gamma_ref[...] * jax.lax.rsqrt(var + EPS)      # rsqrt -> EUP slot
            h = h * s + (beta_ref[...] - m1 * s)               # folded scale/shift
        else:
            h = h + b1_ref[...]
        h = jnp.maximum(h, 0.0)                                # ReLU

        # GEMM2: (B, th) @ (th, Out_p), bf16 MXU, f32 accumulation.
        acc_out_ref[...] += jnp.dot(h.astype(jnp.bfloat16), w2_ref[...],
                                    preferred_element_type=jnp.float32)

    @pl.when(jnp.logical_and(k == nk - 1, i == ni - 1))
    def _():
        o_ref[...] = (acc_out_ref[...] + b2_ref[...]).astype(o_ref.dtype)


def mlp_forward(x, w1, b1, gamma, beta, w2, b2, *, batchnorm=True,
                out_dtype=jnp.float32):
    """Fused MLP forward (train-mode BN).

    x:(B,In)  w1:(In,H)  b1:(H,)  gamma,beta:(H,)  w2:(H,Out)  b2:(Out,)
    """
    B, in_dim = x.shape
    hidden_dim = w1.shape[1]
    out_dim = w2.shape[1]

    out_p = _round_up(out_dim, 128)
    out_itemsize = jnp.dtype(out_dtype).itemsize

    # ---- tile selection under a ~40 MiB per-step VMEM budget (v7x-safe). ----
    def vmem_est(ti, th):
        return (2 * B * ti * 2              # x block (bf16, double-buffered)
                + 2 * ti * th * 2           # W1 block
                + 2 * th * out_p * 2        # W2 block
                + 6 * th * 4                # b1 / gamma / beta blocks
                + 2 * out_p * 4             # b2 block
                + 2 * B * out_p * out_itemsize   # output block
                + B * th * 4                # GEMM1 accumulator scratch
                + B * out_p * 4)            # GEMM2 accumulator scratch

    ti = min(512, _round_up(in_dim, 128))
    th = min(256, _round_up(hidden_dim, 128))
    budget = 40 * 2**20
    while vmem_est(ti, th) > budget and (ti > 128 or th > 128):
        if ti >= th and ti > 128:
            ti = max(128, _round_up(ti // 2, 128))
        else:
            th = max(128, _round_up(th // 2, 128))
    # TODO(synk): for very large output_dim * batch the full-width output
    # accumulator may still exceed VMEM; an output-block grid axis would be
    # needed in that regime.

    in_p = _round_up(in_dim, ti)
    h_p = _round_up(hidden_dim, th)

    def pad2(a, rows, cols):
        return jnp.pad(a, ((0, rows - a.shape[0]), (0, cols - a.shape[1])))

    # Zero padding is load-bearing: padded hidden/output features stay zero
    # through BN (gamma=0), ReLU, W2 (zero rows/cols) and b2.
    xp = pad2(x, B, in_p).astype(jnp.bfloat16)
    w1p = pad2(w1, in_p, h_p).astype(jnp.bfloat16)
    b1p = pad2(b1.reshape(1, -1), 1, h_p).astype(jnp.float32)
    gp = pad2(gamma.reshape(1, -1), 1, h_p).astype(jnp.float32)
    btp = pad2(beta.reshape(1, -1), 1, h_p).astype(jnp.float32)
    w2p = pad2(w2, h_p, out_p).astype(jnp.bfloat16)
    b2p = pad2(b2.reshape(1, -1), 1, out_p).astype(jnp.float32)

    grid = (h_p // th, in_p // ti)

    flops = 2 * B * in_p * h_p + 2 * B * h_p * out_p + 8 * B * h_p
    bytes_accessed = (xp.size * 2 + w1p.size * 2 + w2p.size * 2
                      + (b1p.size + gp.size + btp.size + b2p.size) * 4
                      + B * out_p * out_itemsize)

    kernel = functools.partial(mlp_kernel, batchnorm=batchnorm)

    out_padded = pl.pallas_call(
        kernel,
        out_shape=jax.ShapeDtypeStruct((B, out_p), out_dtype),
        grid_spec=pltpu.PrefetchScalarGridSpec(
            num_scalar_prefetch=0,
            grid=grid,
            in_specs=[
                pl.BlockSpec((B, ti), lambda k, i: (0, i)),      # x
                pl.BlockSpec((ti, th), lambda k, i: (i, k)),     # W1
                pl.BlockSpec((1, th), lambda k, i: (0, k)),      # b1
                pl.BlockSpec((1, th), lambda k, i: (0, k)),      # gamma
                pl.BlockSpec((1, th), lambda k, i: (0, k)),      # beta
                pl.BlockSpec((th, out_p), lambda k, i: (k, 0)),  # W2
                pl.BlockSpec((1, out_p), lambda k, i: (0, 0)),   # b2
            ],
            out_specs=pl.BlockSpec((B, out_p), lambda k, i: (0, 0)),
            scratch_shapes=[
                pltpu.VMEM((B, th), jnp.float32),       # GEMM1 accumulator
                pltpu.VMEM((B, out_p), jnp.float32),    # GEMM2 accumulator
            ],
        ),
        compiler_params=pltpu.CompilerParams(
            dimension_semantics=("arbitrary", "arbitrary"),
            vmem_limit_bytes=int(min(max(vmem_est(ti, th) * 3 // 2,
                                         16 * 2**20), 112 * 2**20)),
        ),
        cost_estimate=pl.CostEstimate(
            flops=flops, transcendentals=0, bytes_accessed=bytes_accessed),
    )(xp, w1p, b1p, gp, btp, w2p, b2p)

    return out_padded[:, :out_dim]


# ----------------------------------------------------------------------------
# References
# ----------------------------------------------------------------------------
def reference_f32(x, w1, b1, gamma, beta, w2, b2, batchnorm=True):
    h = x @ w1 + b1
    if batchnorm:
        mean = jnp.mean(h, axis=0, keepdims=True)
        var = jnp.mean((h - mean) ** 2, axis=0, keepdims=True)
        h = (h - mean) * jax.lax.rsqrt(var + EPS)
        h = h * gamma + beta
    h = jnp.maximum(h, 0.0)
    return h @ w2 + b2


def reference_bf16_path(x, w1, b1, gamma, beta, w2, b2, batchnorm=True):
    # Mirrors the kernel's numeric path (bf16 MXU operands, f32 acc, f32 BN).
    h = jnp.dot(x.astype(jnp.bfloat16), w1.astype(jnp.bfloat16),
                preferred_element_type=jnp.float32)
    if batchnorm:
        h = h + b1  # kept to demonstrate it cancels under train-mode BN
        mean = jnp.mean(h, axis=0, keepdims=True)
        var = jnp.mean((h - mean) ** 2, axis=0, keepdims=True)
        h = (h - mean) * (gamma * jax.lax.rsqrt(var + EPS)) + beta
    else:
        h = h + b1
    h = jnp.maximum(h, 0.0)
    return jnp.dot(h.astype(jnp.bfloat16), w2.astype(jnp.bfloat16),
                   preferred_element_type=jnp.float32) + b2


if __name__ == "__main__":
    # Small, deliberately non-128-aligned shapes to exercise padding.
    B, input_dim, hidden_dim, output_dim = 16, 48, 96, 40

    key = jax.random.PRNGKey(0)
    kx, kw1, kb1, kw2, kb2, kg, kbt = jax.random.split(key, 7)

    x = jax.random.normal(kx, (B, input_dim), dtype=jnp.float32)

    # PyTorch-style uniform(-1/sqrt(fan_in), 1/sqrt(fan_in)) init.
    s1 = 1.0 / jnp.sqrt(input_dim)
    w1 = jax.random.uniform(kw1, (input_dim, hidden_dim), jnp.float32, -s1, s1)
    b1 = jax.random.uniform(kb1, (hidden_dim,), jnp.float32, -s1, s1)

    s2 = 1.0 / jnp.sqrt(hidden_dim)
    w2 = jax.random.uniform(kw2, (hidden_dim, output_dim), jnp.float32, -s2, s2)
    b2 = jax.random.uniform(kb2, (output_dim,), jnp.float32, -s2, s2)

    gamma = jax.random.uniform(kg, (hidden_dim,), jnp.float32, 0.5, 1.5)
    beta = 0.1 * jax.random.normal(kbt, (hidden_dim,), jnp.float32)

    # --- batchnorm=True (the default module configuration) ---
    out = jax.block_until_ready(
        mlp_forward(x, w1, b1, gamma, beta, w2, b2, batchnorm=True))
    assert out.shape == (B, output_dim)
    ref_lo = reference_bf16_path(x, w1, b1, gamma, beta, w2, b2, batchnorm=True)
    ref_hi = reference_f32(x, w1, b1, gamma, beta, w2, b2, batchnorm=True)
    assert jnp.allclose(out, ref_lo, atol=1e-2, rtol=1e-2), "BN path: mismatch vs bf16 ref"
    assert jnp.allclose(out, ref_hi, atol=5e-2, rtol=5e-2), "BN path: mismatch vs f32 ref"

    # --- batchnorm=False path (Linear -> ReLU -> Linear) ---
    out_nb = jax.block_until_ready(
        mlp_forward(x, w1, b1, gamma, beta, w2, b2, batchnorm=False))
    ref_nb_lo = reference_bf16_path(x, w1, b1, gamma, beta, w2, b2, batchnorm=False)
    ref_nb_hi = reference_f32(x, w1, b1, gamma, beta, w2, b2, batchnorm=False)
    assert jnp.allclose(out_nb, ref_nb_lo, atol=1e-2, rtol=1e-2), "no-BN: mismatch vs bf16 ref"
    assert jnp.allclose(out_nb, ref_nb_hi, atol=5e-2, rtol=5e-2), "no-BN: mismatch vs f32 ref"

    print("KERNEL_OK")
</pallas_src>

<mosaic_0001>
module attributes {stable_mosaic.version = 11 : i64} {
  func.func @mlp_kernel(%arg0: i32, %arg1: i32, %arg2: memref<16x128xbf16, #tpu.memory_space<vmem>>, %arg3: memref<128x128xbf16, #tpu.memory_space<vmem>>, %arg4: memref<1x128xf32, #tpu.memory_space<vmem>>, %arg5: memref<1x128xf32, #tpu.memory_space<vmem>>, %arg6: memref<1x128xf32, #tpu.memory_space<vmem>>, %arg7: memref<128x128xbf16, #tpu.memory_space<vmem>>, %arg8: memref<1x128xf32, #tpu.memory_space<vmem>>, %arg9: memref<16x128xf32, #tpu.memory_space<vmem>>, %arg10: memref<16x128xf32, #tpu.memory_space<vmem>>, %arg11: memref<16x128xf32, #tpu.memory_space<vmem>>) attributes {dimension_semantics = [#tpu.dimension_semantics<arbitrary>, #tpu.dimension_semantics<arbitrary>], iteration_bounds = array<i64: 1, 1>, scalar_prefetch = 0 : i64, scratch_operands = 2 : i64, tpu.core_type = #tpu.core_type<tc>, window_params = [{transform_indices = @transform_0, window_bounds = array<i64: 16, 128>}, {transform_indices = @transform_1, window_bounds = array<i64: 128, 128>}, {transform_indices = @transform_2, window_bounds = array<i64: 1, 128>}, {transform_indices = @transform_3, window_bounds = array<i64: 1, 128>}, {transform_indices = @transform_4, window_bounds = array<i64: 1, 128>}, {transform_indices = @transform_5, window_bounds = array<i64: 128, 128>}, {pipeline_mode = #tpu.pipeline_mode<synchronous>, transform_indices = @transform_6, window_bounds = array<i64: 1, 128>}, {pipeline_mode = #tpu.pipeline_mode<synchronous>, transform_indices = @transform_7, window_bounds = array<i64: 16, 128>}]} {
    %c0_i32 = arith.constant 0 : i32
    %0 = arith.cmpi eq, %arg0, %c0_i32 : i32
    %c0_i32_0 = arith.constant 0 : i32
    %1 = arith.cmpi eq, %arg1, %c0_i32_0 : i32
    %2 = arith.andi %0, %1 : i1
    %3 = arith.extui %2 : i1 to i32
    %c0_i32_1 = arith.constant 0 : i32
    %4 = arith.cmpi ne, %3, %c0_i32_1 : i32
    scf.if %4 {
      %cst_16 = arith.constant 0.000000e+00 : f32
      %22 = vector.broadcast %cst_16 : f32 to vector<16x128xf32>
      %c0_17 = arith.constant 0 : index
      %c0_18 = arith.constant 0 : index
      %23 = vector.load %arg11[%c0_17, %c0_18] : memref<16x128xf32, #tpu.memory_space<vmem>>, vector<16x128xf32>
      tpu.vector_store %arg11[%c0_17, %c0_18], %22 {strides = array<i32>} : memref<16x128xf32, #tpu.memory_space<vmem>>, vector<16x128xf32>,
    } else {
    }
    %c0_i32_2 = arith.constant 0 : i32
    %5 = arith.cmpi eq, %arg1, %c0_i32_2 : i32
    %6 = arith.extui %5 : i1 to i32
    %c0_i32_3 = arith.constant 0 : i32
    %7 = arith.cmpi ne, %6, %c0_i32_3 : i32
    scf.if %7 {
      %cst_16 = arith.constant 0.000000e+00 : f32
      %22 = vector.broadcast %cst_16 : f32 to vector<16x128xf32>
      %c0_17 = arith.constant 0 : index
      %c0_18 = arith.constant 0 : index
      %23 = vector.load %arg10[%c0_17, %c0_18] : memref<16x128xf32, #tpu.memory_space<vmem>>, vector<16x128xf32>
      tpu.vector_store %arg10[%c0_17, %c0_18], %22 {strides = array<i32>} : memref<16x128xf32, #tpu.memory_space<vmem>>, vector<16x128xf32>,
    } else {
    }
    %c0 = arith.constant 0 : index
    %c0_4 = arith.constant 0 : index
    %8 = vector.load %arg10[%c0, %c0_4] : memref<16x128xf32, #tpu.memory_space<vmem>>, vector<16x128xf32>
    %c0_5 = arith.constant 0 : index
    %c0_6 = arith.constant 0 : index
    %9 = vector.load %arg2[%c0_5, %c0_6] : memref<16x128xbf16, #tpu.memory_space<vmem>>, vector<16x128xbf16>
    %c0_7 = arith.constant 0 : index
    %c0_8 = arith.constant 0 : index
    %10 = vector.load %arg3[%c0_7, %c0_8] : memref<128x128xbf16, #tpu.memory_space<vmem>>, vector<128x128xbf16>
    %cst = arith.constant dense<0.000000e+00> : vector<16x128xf32>
    %11 = tpu.matmul %9, %10, %cst {dimension_numbers = #tpu.dot_dimension_numbers<[1], [0], [0], [1], [0, 0, 1, 1], [], []>} : vector<16x128xbf16>, vector<128x128xbf16>, vector<16x128xf32> -> vector<16x128xf32>
    %12 = arith.addf %8, %11 : vector<16x128xf32>
    %c0_9 = arith.constant 0 : index
    %c0_10 = arith.constant 0 : index
    %13 = vector.load %arg10[%c0_9, %c0_10] : memref<16x128xf32, #tpu.memory_space<vmem>>, vector<16x128xf32>
    tpu.vector_store %arg10[%c0_9, %c0_10], %12 {strides = array<i32>} : memref<16x128xf32, #tpu.memory_space<vmem>>, vector<16x128xf32>,
    %c0_i32_11 = arith.constant 0 : i32
    %14 = arith.cmpi eq, %arg1, %c0_i32_11 : i32
    %15 = arith.extui %14 : i1 to i32
    %c0_i32_12 = arith.constant 0 : i32
    %16 = arith.cmpi ne, %15, %c0_i32_12 : i32
    scf.if %16 {
      %c0_16 = arith.constant 0 : index
      %c0_17 = arith.constant 0 : index
      %22 = vector.load %arg10[%c0_16, %c0_17] : memref<16x128xf32, #tpu.memory_space<vmem>>, vector<16x128xf32>
      %cst_18 = arith.constant dense<0.000000e+00> : vector<128xf32>
      %23 = vector.multi_reduction <add>, %22, %cst_18 [0] : vector<16x128xf32> to vector<128xf32>
      %24 = vector.shape_cast %23 : vector<128xf32> to vector<1x128xf32>
      %cst_19 = arith.constant 1.600000e+01 : f32
      %25 = vector.broadcast %cst_19 : f32 to vector<1x128xf32>
      %26 = arith.divf %24, %25 : vector<1x128xf32>
      %27 = arith.mulf %22, %22 : vector<16x128xf32>
      %cst_20 = arith.constant dense<0.000000e+00> : vector<128xf32>
      %28 = vector.multi_reduction <add>, %27, %cst_20 [0] : vector<16x128xf32> to vector<128xf32>
      %29 = vector.shape_cast %28 : vector<128xf32> to vector<1x128xf32>
      %cst_21 = arith.constant 1.600000e+01 : f32
      %30 = vector.broadcast %cst_21 : f32 to vector<1x128xf32>
      %31 = arith.divf %29, %30 : vector<1x128xf32>
      %32 = arith.mulf %26, %26 : vector<1x128xf32>
      %33 = arith.subf %31, %32 : vector<1x128xf32>
      %cst_22 = arith.constant 0.000000e+00 : f32
      %34 = vector.broadcast %cst_22 : f32 to vector<1x128xf32>
      %35 = arith.maximumf %33, %34 : vector<1x128xf32>
      %c0_23 = arith.constant 0 : index
      %c0_24 = arith.constant 0 : index
      %36 = vector.load %arg5[%c0_23, %c0_24] : memref<1x128xf32, #tpu.memory_space<vmem>>, vector<1x128xf32>
      %cst_25 = arith.constant 9.99999974E-6 : f32
      %37 = vector.broadcast %cst_25 : f32 to vector<1x128xf32>
      %38 = arith.addf %35, %37 : vector<1x128xf32>
      %39 = math.rsqrt %38 : vector<1x128xf32>
      %40 = arith.mulf %36, %39 : vector<1x128xf32>
      %41 = vector.broadcast %40 : vector<1x128xf32> to vector<16x128xf32>
      %42 = arith.mulf %22, %41 : vector<16x128xf32>
      %c0_26 = arith.constant 0 : index
      %c0_27 = arith.constant 0 : index
      %43 = vector.load %arg6[%c0_26, %c0_27] : memref<1x128xf32, #tpu.memory_space<vmem>>, vector<1x128xf32>
      %44 = arith.mulf %26, %40 : vector<1x128xf32>
      %45 = arith.subf %43, %44 : vector<1x128xf32>
      %46 = vector.broadcast %45 : vector<1x128xf32> to vector<16x128xf32>
      %47 = arith.addf %42, %46 : vector<16x128xf32>
      %cst_28 = arith.constant 0.000000e+00 : f32
      %48 = vector.broadcast %cst_28 : f32 to vector<16x128xf32>
      %49 = arith.maximumf %47, %48 : vector<16x128xf32>
      %c0_29 = arith.constant 0 : index
      %c0_30 = arith.constant 0 : index
      %50 = vector.load %arg11[%c0_29, %c0_30] : memref<16x128xf32, #tpu.memory_space<vmem>>, vector<16x128xf32>
      %51 = arith.truncf %49 : vector<16x128xf32> to vector<16x128xbf16>
      %c0_31 = arith.constant 0 : index
      %c0_32 = arith.constant 0 : index
      %52 = vector.load %arg7[%c0_31, %c0_32] : memref<128x128xbf16, #tpu.memory_space<vmem>>, vector<128x128xbf16>
      %cst_33 = arith.constant dense<0.000000e+00> : vector<16x128xf32>
      %53 = tpu.matmul %51, %52, %cst_33 {dimension_numbers = #tpu.dot_dimension_numbers<[1], [0], [0], [1], [0, 0, 1, 1], [], []>} : vector<16x128xbf16>, vector<128x128xbf16>, vector<16x128xf32> -> vector<16x128xf32>
      %54 = arith.addf %50, %53 : vector<16x128xf32>
      %c0_34 = arith.constant 0 : index
      %c0_35 = arith.constant 0 : index
      %55 = vector.load %arg11[%c0_34, %c0_35] : memref<16x128xf32, #tpu.memory_space<vmem>>, vector<16x128xf32>
      tpu.vector_store %arg11[%c0_34, %c0_35], %54 {strides = array<i32>} : memref<16x128xf32, #tpu.memory_space<vmem>>, vector<16x128xf32>,
    } else {
    }
    %c0_i32_13 = arith.constant 0 : i32
    %17 = arith.cmpi eq, %arg0, %c0_i32_13 : i32
    %c0_i32_14 = arith.constant 0 : i32
    %18 = arith.cmpi eq, %arg1, %c0_i32_14 : i32
    %19 = arith.andi %17, %18 : i1
    %20 = arith.extui %19 : i1 to i32
    %c0_i32_15 = arith.constant 0 : i32
    %21 = arith.cmpi ne, %20, %c0_i32_15 : i32
    scf.if %21 {
      %c0_16 = arith.constant 0 : index
      %c0_17 = arith.constant 0 : index
      %22 = vector.load %arg11[%c0_16, %c0_17] : memref<16x128xf32, #tpu.memory_space<vmem>>, vector<16x128xf32>
      %c0_18 = arith.constant 0 : index
      %c0_19 = arith.constant 0 : index
      %23 = vector.load %arg8[%c0_18, %c0_19] : memref<1x128xf32, #tpu.memory_space<vmem>>, vector<1x128xf32>
      %24 = vector.broadcast %23 : vector<1x128xf32> to vector<16x128xf32>
      %25 = arith.addf %22, %24 : vector<16x128xf32>
      %c0_20 = arith.constant 0 : index
      %c0_21 = arith.constant 0 : index
      %26 = vector.load %arg9[%c0_20, %c0_21] : memref<16x128xf32, #tpu.memory_space<vmem>>, vector<16x128xf32>
      tpu.vector_store %arg9[%c0_20, %c0_21], %25 {strides = array<i32>} : memref<16x128xf32, #tpu.memory_space<vmem>>, vector<16x128xf32>,
    } else {
    }
    return
  }
  func.func @transform_0(%arg0: i32, %arg1: i32) -> (i32, i32) {
    %c0_i32 = arith.constant 0 : i32
    %c0_i32_0 = arith.constant 0 : i32
    return %c0_i32, %arg1 : i32, i32
  }
  func.func @transform_1(%arg0: i32, %arg1: i32) -> (i32, i32) {
    %c0_i32 = arith.constant 0 : i32
    return %arg1, %arg0 : i32, i32
  }
  func.func @transform_2(%arg0: i32, %arg1: i32) -> (i32, i32) {
    %c0_i32 = arith.constant 0 : i32
    %c0_i32_0 = arith.constant 0 : i32
    return %c0_i32, %arg0 : i32, i32
  }
  func.func @transform_3(%arg0: i32, %arg1: i32) -> (i32, i32) {
    %c0_i32 = arith.constant 0 : i32
    %c0_i32_0 = arith.constant 0 : i32
    return %c0_i32, %arg0 : i32, i32
  }
  func.func @transform_4(%arg0: i32, %arg1: i32) -> (i32, i32) {
    %c0_i32 = arith.constant 0 : i32
    %c0_i32_0 = arith.constant 0 : i32
    return %c0_i32, %arg0 : i32, i32
  }
  func.func @transform_5(%arg0: i32, %arg1: i32) -> (i32, i32) {
    %c0_i32 = arith.constant 0 : i32
    %c0_i32_0 = arith.constant 0 : i32
    return %arg0, %c0_i32 : i32, i32
  }
  func.func @transform_6(%arg0: i32, %arg1: i32) -> (i32, i32) {
    %c0_i32 = arith.constant 0 : i32
    %c0_i32_0 = arith.constant 0 : i32
    %c0_i32_1 = arith.constant 0 : i32
    return %c0_i32, %c0_i32_0 : i32, i32
  }
  func.func @transform_7(%arg0: i32, %arg1: i32) -> (i32, i32) {
    %c0_i32 = arith.constant 0 : i32
    %c0_i32_0 = arith.constant 0 : i32
    %c0_i32_1 = arith.constant 0 : i32
    return %c0_i32, %c0_i32_0 : i32, i32
  }
}

</mosaic_0001>

<llo_original>
// kernel: tpu_custom_call.1
$region0: #{tpu_custom_call.1}
  #allocation0 [shape = 'u32[]', space=smem, size = 0x4, offset = 0x4, fixed_abs, tag = 'smem constant byte address 0x4 - core index']
  #allocation1 [shape = 'u32[72,128]{1,0:T(1,128)}', space=vmem, size = 0x9000, scoped, tag = 'internal scratch']
  #allocation2 [shape = 'f32[16,128]{1,0:T(8,128)}', space=vmem, size = 0x2000, scoped, tag = 'scratch operand']
  #allocation3 [shape = 'f32[16,128]{1,0:T(8,128)}', space=vmem, size = 0x2000, scoped, tag = 'scratch operand']
  %s0 = inlined_call_operand.hbm [shape: bf16[16,128], index: 0, kind: input, shape index: {}]
  %s1 = inlined_call_operand.hbm [shape: bf16[128,128], index: 1, kind: input, shape index: {}]
  %s2 = inlined_call_operand.vmem [shape: f32[1,128], index: 2, kind: input, shape index: {}]
  %s3 = inlined_call_operand.vmem [shape: f32[1,128], index: 3, kind: input, shape index: {}]
  %s4 = inlined_call_operand.vmem [shape: f32[1,128], index: 4, kind: input, shape index: {}]
  %s5 = inlined_call_operand.hbm [shape: bf16[128,128], index: 5, kind: input, shape index: {}]
  %s6 = inlined_call_operand.vmem [shape: f32[1,128], index: 6, kind: input, shape index: {}]
  %s7 = inlined_call_operand.hbm [shape: f32[16,128], index: 7, kind: output, shape index: {}]
  %s8 = sld [smem:[#allocation0]]
  $region66: #{tpu_custom_call.1} parent=0
    _
  %s10 = ssub.s32 1, %s8
  %s11 = scalar_select 0, %s10, %s8
  $region1: #{tpu_custom_call.1} parent=0
    #allocation4 [shape = 'u8[4096]{0}', space=vmem, size = 0x1000, scoped, tag = 'input window, operand 0, single buffered']
    #allocation5 [shape = 's32[1]{0}', space=sflag, size = 0x4, scoped, tag = 'scoped memory for tpu_custom_call.1']
    #allocation6 [shape = 's32[1]{0}', space=sflag, size = 0x4, scoped, tag = 'scoped memory for tpu_custom_call.1']
    #allocation7 [shape = 'u8[32768]{0}', space=vmem, size = 0x8000, scoped, tag = 'input window, operand 1, single buffered']
    #allocation8 [shape = 's32[1]{0}', space=sflag, size = 0x4, scoped, tag = 'scoped memory for tpu_custom_call.1']
    #allocation9 [shape = 'u8[32768]{0}', space=vmem, size = 0x8000, scoped, tag = 'input window, operand 5, single buffered']
    #allocation10 [shape = 'u8[8192]{0}', space=vmem, size = 0x2000, scoped, tag = 'output window, operand 0, single buffered']
    %12 = vsyncpa [#allocation5], 0
    %13 = vsyncpa [#allocation8], 0
    %14 = vsyncpa [#allocation6], 0
    // Predicated region
    $region2: #{tpu_custom_call.1} parent=1 // pred_check
      _
    $region3: #{tpu_custom_call.1} parent=1 // pred_check_branch
      %16 = sbr.rel (0) target = $region5
    $region4: #{tpu_custom_call.1} parent=1 // pred_region
      %18 = vsyncadd [#allocation5], 0
      %s19 = sshll.u32 %s0, 4
      %s20 = int_to_ptr.hbm [resolvable:$true] %s19
      %s21 = sshll.u32 [#allocation4], 4
      %s22 = int_to_ptr.vmem [resolvable:$true] %s21
      %27 = dma.hbm_to_vmem [thread:$0]  %s20, 128, %s22, [#allocation5], 64, 64, 4
    $region5: #{tpu_custom_call.1} parent=1 // pred_fallthru
      _
    // Predicated region
    $region6: #{tpu_custom_call.1} parent=1 // pred_check
      _
    $region7: #{tpu_custom_call.1} parent=1 // pred_check_branch
      %29 = sbr.rel (0) target = $region9
    $region8: #{tpu_custom_call.1} parent=1 // pred_region
      %31 = vsyncadd [#allocation8], 0
      %s32 = sshll.u32 %s1, 4
      %s33 = int_to_ptr.hbm [resolvable:$true] %s32
      %s34 = sshll.u32 [#allocation7], 4
      %s35 = int_to_ptr.vmem [resolvable:$true] %s34
      %40 = dma.hbm_to_vmem [thread:$0]  %s33, 1024, %s35, [#allocation8], 64, 64, 4
    $region9: #{tpu_custom_call.1} parent=1 // pred_fallthru
      _
    // Predicated region
    $region10: #{tpu_custom_call.1} parent=1 // pred_check
      _
    $region11: #{tpu_custom_call.1} parent=1 // pred_check_branch
      %42 = sbr.rel (0) target = $region13
    $region12: #{tpu_custom_call.1} parent=1 // pred_region
      _
    $region13: #{tpu_custom_call.1} parent=1 // pred_fallthru
      _
    // Predicated region
    $region14: #{tpu_custom_call.1} parent=1 // pred_check
      _
    $region15: #{tpu_custom_call.1} parent=1 // pred_check_branch
      %44 = sbr.rel (0) target = $region17
    $region16: #{tpu_custom_call.1} parent=1 // pred_region
      _
    $region17: #{tpu_custom_call.1} parent=1 // pred_fallthru
      _
    // Predicated region
    $region18: #{tpu_custom_call.1} parent=1 // pred_check
      _
    $region19: #{tpu_custom_call.1} parent=1 // pred_check_branch
      %46 = sbr.rel (0) target = $region21
    $region20: #{tpu_custom_call.1} parent=1 // pred_region
      _
    $region21: #{tpu_custom_call.1} parent=1 // pred_fallthru
      _
    // Predicated region
    $region22: #{tpu_custom_call.1} parent=1 // pred_check
      _
    $region23: #{tpu_custom_call.1} parent=1 // pred_check_branch
      %48 = sbr.rel (0) target = $region25
    $region24: #{tpu_custom_call.1} parent=1 // pred_region
      %50 = vsyncadd [#allocation8], 0
      %s51 = sshll.u32 %s5, 4
      %s52 = int_to_ptr.hbm [resolvable:$true] %s51
      %s53 = sshll.u32 [#allocation9], 4
      %s54 = int_to_ptr.vmem [resolvable:$true] %s53
      %59 = dma.hbm_to_vmem [thread:$0]  %s52, 1024, %s54, [#allocation8], 64, 64, 4
    $region25: #{tpu_custom_call.1} parent=1 // pred_fallthru
      _
    // Predicated region
    $region26: #{tpu_custom_call.1} parent=1 // pred_check
      _
    $region27: #{tpu_custom_call.1} parent=1 // pred_check_branch
      %61 = sbr.rel (0) target = $region29
    $region28: #{tpu_custom_call.1} parent=1 // pred_region
      _
    $region29: #{tpu_custom_call.1} parent=1 // pred_fallthru
      _
    // Predicated region
    $region30: #{tpu_custom_call.1} parent=1 // pred_check
      _
    $region31: #{tpu_custom_call.1} parent=1 // pred_check_branch
      %63 = sbr.rel (0) target = $region33
    $region32: #{tpu_custom_call.1} parent=1 // pred_region
      %65 = dma.done [#allocation5], 128
    $region33: #{tpu_custom_call.1} parent=1 // pred_fallthru
      _
    // Predicated region
    $region34: #{tpu_custom_call.1} parent=1 // pred_check
      _
    $region35: #{tpu_custom_call.1} parent=1 // pred_check_branch
      %67 = sbr.rel (0) target = $region37
    $region36: #{tpu_custom_call.1} parent=1 // pred_region
      %69 = dma.done [#allocation8], 1024
    $region37: #{tpu_custom_call.1} parent=1 // pred_fallthru
      _
    // Predicated region
    $region38: #{tpu_custom_call.1} parent=1 // pred_check
      _
    $region39: #{tpu_custom_call.1} parent=1 // pred_check_branch
      %71 = sbr.rel (0) target = $region41
    $region40: #{tpu_custom_call.1} parent=1 // pred_region
      %73 = dma.done [#allocation8], 1024
    $region41: #{tpu_custom_call.1} parent=1 // pred_fallthru
      _
    %p74 = scmp.eq.s32.totalorder 0, 0
    %p75 = scmp.eq.s32.totalorder 0, 0
    %p76 = pnand %p74, %p75
    %p77 = pneg %p76
    // Predicated region
    $region42: #{tpu_custom_call.1} parent=1 // pred_check
      _
    $region43: #{tpu_custom_call.1} parent=1 // pred_check_branch
      %79 = sbr.rel (%p76) target = $region45
    $region44: #{tpu_custom_call.1} parent=1 // pred_region
      %80 = vst [vmem:[#allocation3] sm:$0xff] 0.0
      %81 = vst [vmem:[#allocation3 + $0x8] sm:$0xff] 0.0
    $region45: #{tpu_custom_call.1} parent=1 // pred_fallthru
      _
    // Predicated region
    $region46: #{tpu_custom_call.1} parent=1 // pred_check
      %p82 = pneg %p75
    $region47: #{tpu_custom_call.1} parent=1 // pred_check_branch
      %84 = sbr.rel (%p82) target = $region49
    $region48: #{tpu_custom_call.1} parent=1 // pred_region
      %85 = vst [vmem:[#allocation2] sm:$0xff] 0.0
      %86 = vst [vmem:[#allocation2 + $0x8] sm:$0xff] 0.0
    $region49: #{tpu_custom_call.1} parent=1 // pred_fallthru
      _
    %v87 = vld [vmem:[#allocation2] sm:$0xff]
    %v88 = vld [vmem:[#allocation2 + $0x8] sm:$0xff]
    %v89 = vld [vmem:[#allocation4] sm:$0xf]
    %v90 = vld [vmem:[#allocation4 + $0x4] sm:$0xf]
    %v91 = vld [vmem:[#allocation7] sm:$0xf]
    %v92 = vld [vmem:[#allocation7 + $0x4] sm:$0xf]
    %v93 = vld [vmem:[#allocation7 + $0x8] sm:$0xf]
    %v94 = vld [vmem:[#allocation7 + $0xc] sm:$0xf]
    %v95 = vld [vmem:[#allocation7 + $0x10] sm:$0xf]
    %v96 = vld [vmem:[#allocation7 + $0x14] sm:$0xf]
    %v97 = vld [vmem:[#allocation7 + $0x18] sm:$0xf]
    %v98 = vld [vmem:[#allocation7 + $0x1c] sm:$0xf]
    %v99 = vld [vmem:[#allocation7 + $0x20] sm:$0xf]
    %v100 = vld [vmem:[#allocation7 + $0x24] sm:$0xf]
    %v101 = vld [vmem:[#allocation7 + $0x28] sm:$0xf]
    %v102 = vld [vmem:[#allocation7 + $0x2c] sm:$0xf]
    %v103 = vld [vmem:[#allocation7 + $0x30] sm:$0xf]
    %v104 = vld [vmem:[#allocation7 + $0x34] sm:$0xf]
    %v105 = vld [vmem:[#allocation7 + $0x38] sm:$0xf]
    %v106 = vld [vmem:[#allocation7 + $0x3c] sm:$0xf]
    %v109 = vunpack.c.l.b16 %v89
    %v110 = vunpack.c.l.b16 %v90
    %v111 = vpack.c.b16 %v110, %v109
    %v129 = vunpack.c.l.b16 %v91
    %v130 = vunpack.c.l.b16 %v92
    %v131 = vunpack.c.l.b16 %v93
    %v132 = vunpack.c.l.b16 %v94
    %v133 = vunpack.c.l.b16 %v95
    %v134 = vunpack.c.l.b16 %v96
    %v135 = vunpack.c.l.b16 %v97
    %v136 = vunpack.c.l.b16 %v98
    %v137 = vunpack.c.l.b16 %v99
    %v138 = vunpack.c.l.b16 %v100
    %v139 = vunpack.c.l.b16 %v101
    %v140 = vunpack.c.l.b16 %v102
    %v141 = vunpack.c.l.b16 %v103
    %v142 = vunpack.c.l.b16 %v104
    %v143 = vunpack.c.l.b16 %v105
    %v144 = vunpack.c.l.b16 %v106
    %v145 = vpack.c.b16 %v130, %v129
    %v146 = vpack.c.b16 %v132, %v131
    %v147 = vpack.c.b16 %v134, %v133
    %v148 = vpack.c.b16 %v136, %v135
    %v149 = vpack.c.b16 %v138, %v137
    %v150 = vpack.c.b16 %v140, %v139
    %v151 = vpack.c.b16 %v142, %v141
    %v152 = vpack.c.b16 %v144, %v143
    %161 = vmatpush.bf16.msra.mxu0 %v152
    %162 = vmatpush.bf16.msra.mxu0 %v151
    %163 = vmatpush.bf16.msra.mxu0 %v150
    %164 = vmatpush.bf16.msra.mxu0 %v149
    %165 = vmatpush.bf16.msra.mxu0 %v148
    %166 = vmatpush.bf16.msra.mxu0 %v147
    %167 = vmatpush.bf16.msra.mxu0 %v146
    %168 = vmatpush.bf16.msra.mxu0 %v145
    %169 = vmatmul.bf16.gmra.mxu0 %v111
    %v170 = vpop.f32.mrf.mxu0
    %v171 = vadd.f32 0.0, %v170
    %v172 = vpop.f32.mrf.mxu0
    %v173 = vadd.f32 0.0, %v172
    %174 = vdwg.mxu0
    %v175 = vadd.f32 %v87, %v171
    %v176 = vadd.f32 %v88, %v173
    %177 = vst [vmem:[#allocation2] sm:$0xff] %v175
    %178 = vst [vmem:[#allocation2 + $0x8] sm:$0xff] %v176
    // Predicated region
    $region50: #{tpu_custom_call.1} parent=1 // pred_check
      %p179 = pneg %p75
    $region51: #{tpu_custom_call.1} parent=1 // pred_check_branch
      %181 = sbr.rel (%p179) target = $region53
    $region52: #{tpu_custom_call.1} parent=1 // pred_region
      %v182 = vld [vmem:[#allocation2] sm:$0xff]
      %v183 = vld [vmem:[#allocation2 + $0x8] sm:$0xff]
      %v184 = vadd.f32 %v182, %v183
      %v185 = vrot.slane %v184, 4
      %v186 = vadd.f32 %v184, %v185
      %v187 = vrot.slane %v186, 2
      %v188 = vadd.f32 %v186, %v187
      %v189 = vrot.slane %v188, 1
      %v190 = vadd.f32 %v188, %v189
      %v191 = vrcp.pop 16.0
      %v192 = vmul.f32 16.0, %v191
      %v193 = vsub.f32 1.0, %v192
      %v194 = vmul.f32 %v191, %v193
      %v195 = vadd.f32 %v191, %v194
      %vm196 = vweird.f32 %v191
      %v197 = vsel %vm196, %v191, %v195
      %v198 = vmul.f32 %v190, %v197
      %v199 = vmul.f32 %v182, %v182
      %v200 = vmul.f32 %v183, %v183
      %v201 = vadd.f32 %v199, %v200
      %v202 = vrot.slane %v201, 4
      %v203 = vadd.f32 %v201, %v202
      %v204 = vrot.slane %v203, 2
      %v205 = vadd.f32 %v203, %v204
      %v206 = vrot.slane %v205, 1
      %v207 = vadd.f32 %v205, %v206
      %v208 = vmul.f32 %v207, %v197
      %v209 = vmul.f32 %v198, %v198
      %v210 = vsub.f32 %v208, %v209
      %v211 = vmax.f32 %v210, 0.0
      %v212 = vld [vmem:[%s3] sm:$0x1]
      %v213 = vadd.f32 %v211, 1e-05
      %v214 = vrsqrt.pop %v213
      %v215 = vmul.f32 %v214, %v213
      %v216 = vmul.f32 %v215, %v214
      %v217 = vmul.f32 0.5, %v216
      %v218 = vsub.f32 1.5, %v217
      %v219 = vmul.f32 %v214, %v218
      %vm220 = vweird.f32 %v213
      %vm221 = vweird.f32 %v214
      %vm222 = vmor %vm220, %vm221
      %v223 = vsel %vm222, %v214, %v219
      %v224 = vmul.f32 %v212, %v223
      %v226 = vperm.slane %v224, 0
      %v228 = vmul.f32 %v182, %v226
      %v229 = vmul.f32 %v183, %v226
      %v230 = vld [vmem:[%s4] sm:$0x1]
      %v231 = vmul.f32 %v198, %v224
      %v232 = vsub.f32 %v230, %v231
      %v234 = vperm.slane %v232, 0
      %v236 = vadd.f32 %v228, %v234
      %v237 = vadd.f32 %v229, %v234
      %v238 = vmax.f32 %v236, 0.0
      %v239 = vmax.f32 %v237, 0.0
      %v240 = vld [vmem:[#allocation3] sm:$0xff]
      %v241 = vld [vmem:[#allocation3 + $0x8] sm:$0xff]
      %v242 = vpack.c.bf16 %v239, %v238
      %v243 = vld [vmem:[#allocation9] sm:$0xf]
      %v244 = vld [vmem:[#allocation9 + $0x4] sm:$0xf]
      %v245 = vld [vmem:[#allocation9 + $0x8] sm:$0xf]
      %v246 = vld [vmem:[#allocation9 + $0xc] sm:$0xf]
      %v247 = vld [vmem:[#allocation9 + $0x10] sm:$0xf]
      %v248 = vld [vmem:[#allocation9 + $0x14] sm:$0xf]
      %v249 = vld [vmem:[#allocation9 + $0x18] sm:$0xf]
      %v250 = vld [vmem:[#allocation9 + $0x1c] sm:$0xf]
      %v251 = vld [vmem:[#allocation9 + $0x20] sm:$0xf]
      %v252 = vld [vmem:[#allocation9 + $0x24] sm:$0xf]
      %v253 = vld [vmem:[#allocation9 + $0x28] sm:$0xf]
      %v254 = vld [vmem:[#allocation9 + $0x2c] sm:$0xf]
      %v255 = vld [vmem:[#allocation9 + $0x30] sm:$0xf]
      %v256 = vld [vmem:[#allocation9 + $0x34] sm:$0xf]
      %v257 = vld [vmem:[#allocation9 + $0x38] sm:$0xf]
      %v258 = vld [vmem:[#allocation9 + $0x3c] sm:$0xf]
      %v275 = vunpack.c.l.b16 %v243
      %v276 = vunpack.c.l.b16 %v244
      %v277 = vunpack.c.l.b16 %v245
      %v278 = vunpack.c.l.b16 %v246
      %v279 = vunpack.c.l.b16 %v247
      %v280 = vunpack.c.l.b16 %v248
      %v281 = vunpack.c.l.b16 %v249
      %v282 = vunpack.c.l.b16 %v250
      %v283 = vunpack.c.l.b16 %v251
      %v284 = vunpack.c.l.b16 %v252
      %v285 = vunpack.c.l.b16 %v253
      %v286 = vunpack.c.l.b16 %v254
      %v287 = vunpack.c.l.b16 %v255
      %v288 = vunpack.c.l.b16 %v256
      %v289 = vunpack.c.l.b16 %v257
      %v290 = vunpack.c.l.b16 %v258
      %v291 = vpack.c.b16 %v276, %v275
      %v292 = vpack.c.b16 %v278, %v277
      %v293 = vpack.c.b16 %v280, %v279
      %v294 = vpack.c.b16 %v282, %v281
      %v295 = vpack.c.b16 %v284, %v283
      %v296 = vpack.c.b16 %v286, %v285
      %v297 = vpack.c.b16 %v288, %v287
      %v298 = vpack.c.b16 %v290, %v289
      %307 = vmatpush.bf16.msra.mxu0 %v298
      %308 = vmatpush.bf16.msra.mxu0 %v297
      %309 = vmatpush.bf16.msra.mxu0 %v296
      %310 = vmatpush.bf16.msra.mxu0 %v295
      %311 = vmatpush.bf16.msra.mxu0 %v294
      %312 = vmatpush.bf16.msra.mxu0 %v293
      %313 = vmatpush.bf16.msra.mxu0 %v292
      %314 = vmatpush.bf16.msra.mxu0 %v291
      %315 = vmatmul.bf16.gmra.mxu0 %v242
      %v316 = vpop.f32.mrf.mxu0
      %v317 = vadd.f32 0.0, %v316
      %v318 = vpop.f32.mrf.mxu0
      %v319 = vadd.f32 0.0, %v318
      %320 = vdwg.mxu0
      %v321 = vadd.f32 %v240, %v317
      %v322 = vadd.f32 %v241, %v319
      %323 = vst [vmem:[#allocation3] sm:$0xff] %v321
      %324 = vst [vmem:[#allocation3 + $0x8] sm:$0xff] %v322
    $region53: #{tpu_custom_call.1} parent=1 // pred_fallthru
      _
    // Predicated region
    $region54: #{tpu_custom_call.1} parent=1 // pred_check
      _
    $region55: #{tpu_custom_call.1} parent=1 // pred_check_branch
      %326 = sbr.rel (%p76) target = $region57
    $region56: #{tpu_custom_call.1} parent=1 // pred_region
      %v327 = vld [vmem:[#allocation3] sm:$0xff]
      %v328 = vld [vmem:[#allocation3 + $0x8] sm:$0xff]
      %v329 = vld [vmem:[%s6] sm:$0x1]
      %v331 = vperm.slane %v329, 0
      %v333 = vadd.f32 %v327, %v331
      %v334 = vadd.f32 %v328, %v331
      %335 = vst [vmem:[#allocation10] sm:$0xff] %v333
      %336 = vst [vmem:[#allocation10 + $0x8] sm:$0xff] %v334
    $region57: #{tpu_custom_call.1} parent=1 // pred_fallthru
      _
    // Predicated region
    $region58: #{tpu_custom_call.1} parent=1 // pred_check
      _
    $region59: #{tpu_custom_call.1} parent=1 // pred_check_branch
      %338 = sbr.rel (0) target = $region61
    $region60: #{tpu_custom_call.1} parent=1 // pred_region
      %340 = vsyncadd [#allocation6], 0
      %s341 = sshll.u32 [#allocation10], 4
      %s342 = int_to_ptr.vmem [resolvable:$true] %s341
      %s343 = sshll.u32 %s7, 4
      %s344 = int_to_ptr.hbm [resolvable:$true] %s343
      %349 = dma.vmem_to_hbm [thread:$0]  %s342, 256, %s344, [#allocation6], 128, 128, 8
    $region61: #{tpu_custom_call.1} parent=1 // pred_fallthru
      _
    // Predicated region
    $region62: #{tpu_custom_call.1} parent=1 // pred_check
      _
    $region63: #{tpu_custom_call.1} parent=1 // pred_check_branch
      %351 = sbr.rel (0) target = $region65
    $region64: #{tpu_custom_call.1} parent=1 // pred_region
      %353 = dma.done [#allocation6], 256
    $region65: #{tpu_custom_call.1} parent=1 // pred_fallthru
      _
    %354 = vsyncpa [#allocation5], 1
    %355 = vsyncpa [#allocation8], 1
    %356 = vsyncpa [#allocation6], 1

</llo_original>
